<compile_context>
chip_gen: v6e
topology: v6e:2x2x1
jax: 0.10.0
libtpu: 0.0.40
codegen_flags: <defaults>
</compile_context>

<pallas_src>
import jax
import jax.numpy as jnp
from jax.experimental import pallas as pl
from jax.experimental.pallas import tpu as pltpu


_LANE = 128          # vreg lane width
_SLAB_COLS = 1024    # lane-dense slab width for the fallback reshape path


def _sublane_multiple(itemsize: int) -> int:
    # f32 -> 8 rows, bf16 -> 16, int8/fp8 -> 32 (sub-32-bit packs along sublanes).
    return {4: 8, 2: 16, 1: 32}.get(itemsize, 8)


def basic_nn_kernel(params_ref, x_ref, o_ref):
    # params_ref: SMEM (7,) f32 -> [w00, b00, w01, w10, b01, w11, final_bias]
    w00 = params_ref[0]
    b00 = params_ref[1]
    w01 = params_ref[2]
    w10 = params_ref[3]
    b01 = params_ref[4]
    w11 = params_ref[5]
    final_bias = params_ref[6]

    # Compute in f32 even if storage is bf16 (kernel is memory-bound anyway).
    x = x_ref[...].astype(jnp.float32)

    top = jnp.maximum(x * w00 + b00, 0.0) * w01
    bot = jnp.maximum(x * w10 + b01, 0.0) * w11
    out = jnp.maximum(top + bot + final_bias, 0.0)

    o_ref[...] = out.astype(o_ref.dtype)


def _row_tile(n_rows: int, n_cols: int, itemsize: int, sub: int, tile_bytes: int) -> int:
    """Largest row tile (multiple of `sub`, or the full extent) within budget."""
    if n_rows * n_cols * itemsize <= tile_bytes:
        return n_rows                                   # single-block fast path
    tr = tile_bytes // (n_cols * itemsize)
    tr = max(sub, (tr // sub) * sub)
    return min(tr, n_rows)


def _run_2d(x2d, params, tr, *, donate_x=False):
    B, N = x2d.shape
    itemsize = jnp.dtype(x2d.dtype).itemsize
    grid = (pl.cdiv(B, tr),)                            # ragged last block is OK

    tile_bytes_actual = tr * N * itemsize
    # 2x double-buffered input + 2x output tiles plus slack; explicit so the
    # same budget also compiles on v5e's 16 MiB scoped default, and capped
    # well under v7x's 64 MiB physical VMEM.
    vmem_limit = int(min(48 << 20, max(32 << 20, 4 * tile_bytes_actual + (2 << 20))))

    total = B * N
    cost = pl.CostEstimate(
        flops=11 * total,
        transcendentals=0,
        bytes_accessed=2 * total * itemsize,
    )

    kwargs = {}
    if donate_x:
        # NOTE: only pays off if the caller also donates x at the jax.jit
        # boundary (donate_argnums); the alias alone does not reclaim HBM.
        kwargs["input_output_aliases"] = {1: 0}

    return pl.pallas_call(
        basic_nn_kernel,
        out_shape=jax.ShapeDtypeStruct((B, N), x2d.dtype),
        grid=grid,
        in_specs=[
            pl.BlockSpec(memory_space=pltpu.SMEM),        # scalar params
            pl.BlockSpec((tr, N), lambda i: (i, 0)),      # full-row x tile
        ],
        out_specs=pl.BlockSpec((tr, N), lambda i: (i, 0)),
        compiler_params=pltpu.CompilerParams(
            # No reduction axis; steps are independent so the runtime may
            # shard them across TensorCores (relevant on v7x megacore).
            dimension_semantics=("parallel",),
            vmem_limit_bytes=vmem_limit,
        ),
        cost_estimate=cost,
        **kwargs,
    )(params, x2d)


def basic_nn_forward(x, params, *, tile_bytes=4 << 20, donate_x=False):
    """Elementwise BasicNN forward for an arbitrarily shaped array `x`.

    params: (7,) f32 = [w00, b00, w01, w10, b01, w11, final_bias].
    """
    orig_shape = x.shape
    itemsize = jnp.dtype(x.dtype).itemsize
    sub = _sublane_multiple(itemsize)
    total = int(x.size)

    # Direct path: x is already a lane-dense 2-D slab we can stream with full-
    # row tiles and zero wrapper copies.
    if x.ndim == 2 and x.shape[1] % _LANE == 0:
        B, N = x.shape
        single_block = B * N * itemsize <= tile_bytes
        if single_block or (B % sub == 0 and sub * N * itemsize <= tile_bytes):
            tr = _row_tile(B, N, itemsize, sub, tile_bytes)
            return _run_2d(x, params, tr, donate_x=donate_x)

    # Fallback: flatten + zero-pad into a (rows, 1024) lane-dense slab so every
    # DMA is contiguous and every store is full lane width (no masked vst.msk).
    # Elementwise semantics make the reshape/pad safe; pad is sliced off below.
    cols = _SLAB_COLS
    rows_needed = pl.cdiv(total, cols)
    tr = _row_tile(rows_needed, cols, itemsize, sub, tile_bytes)
    rows = pl.cdiv(rows_needed, tr) * tr                # tiles divide exactly
    padded = rows * cols

    xf = jnp.ravel(x)
    if padded != total:
        xf = jnp.pad(xf, (0, padded - total))
    x2d = xf.reshape(rows, cols)

    out2d = _run_2d(x2d, params, tr)
    return jnp.ravel(out2d)[:total].reshape(orig_shape)


def basic_nn_reference(x, params):
    w00, b00, w01, w10, b01, w11, final_bias = [params[i] for i in range(7)]
    top = jnp.maximum(x * w00 + b00, 0.0) * w01
    bot = jnp.maximum(x * w10 + b01, 0.0) * w11
    return jnp.maximum(top + bot + final_bias, 0.0)


if __name__ == "__main__":
    # Deterministic parameters exactly as in BasicNN.__init__.
    params = jnp.array(
        [1.7, -0.85, -40.8, 12.6, 0.0, 2.7, -16.0], dtype=jnp.float32
    )
    key = jax.random.PRNGKey(0)

    # 1) Lane-dense 2-D input (doses in [0,1]); 256 KiB fits the 4 MiB budget,
    #    so the single-block fast path is taken (grid = (1,)).
    x1 = jax.random.uniform(key, (128, 512), dtype=jnp.float32)
    out1 = jax.block_until_ready(basic_nn_forward(x1, params))
    ref1 = basic_nn_reference(x1, params)
    assert out1.shape == x1.shape and out1.dtype == x1.dtype
    assert jnp.allclose(out1, ref1, atol=1e-5, rtol=1e-5), "mismatch (fast path)"

    # 2) Same input with a tiny tile budget to exercise the multi-step,
    #    full-row-tile pipelined path (tr = 32 rows -> grid = (4,)).
    out2 = jax.block_until_ready(basic_nn_forward(x1, params, tile_bytes=64 * 1024))
    assert jnp.allclose(out2, ref1, atol=1e-5, rtol=1e-5), "mismatch (tiled path)"

    # 3) Awkward, non-lane-aligned shape exercising the flatten/pad slab path.
    x3 = jax.random.uniform(jax.random.PRNGKey(0), (3, 7, 50), dtype=jnp.float32)
    out3 = jax.block_until_ready(basic_nn_forward(x3, params))
    ref3 = basic_nn_reference(x3, params)
    assert out3.shape == x3.shape and out3.dtype == x3.dtype
    assert jnp.allclose(out3, ref3, atol=1e-5, rtol=1e-5), "mismatch (slab path)"

    print("KERNEL_OK")
</pallas_src>

<mosaic_0001>
module attributes {stable_mosaic.version = 11 : i64} {
  func.func @basic_nn_kernel(%arg0: i32, %arg1: memref<7xf32, #tpu.memory_space<smem>>, %arg2: memref<128x512xf32, #tpu.memory_space<vmem>>, %arg3: memref<128x512xf32, #tpu.memory_space<vmem>>) attributes {dimension_semantics = [#tpu.dimension_semantics<parallel>], iteration_bounds = array<i64: 1>, scalar_prefetch = 0 : i64, scratch_operands = 0 : i64, tpu.core_type = #tpu.core_type<tc>, window_params = [{transform_indices = @transform_0, window_bounds = array<i64: 7>}, {transform_indices = @transform_1, window_bounds = array<i64: 128, 512>}, {transform_indices = @transform_2, window_bounds = array<i64: 128, 512>}]} {
    %c0 = arith.constant 0 : index
    %0 = memref.load %arg1[%c0] : memref<7xf32, #tpu.memory_space<smem>>
    %c1 = arith.constant 1 : index
    %1 = memref.load %arg1[%c1] : memref<7xf32, #tpu.memory_space<smem>>
    %c2 = arith.constant 2 : index
    %2 = memref.load %arg1[%c2] : memref<7xf32, #tpu.memory_space<smem>>
    %c3 = arith.constant 3 : index
    %3 = memref.load %arg1[%c3] : memref<7xf32, #tpu.memory_space<smem>>
    %c4 = arith.constant 4 : index
    %4 = memref.load %arg1[%c4] : memref<7xf32, #tpu.memory_space<smem>>
    %c5 = arith.constant 5 : index
    %5 = memref.load %arg1[%c5] : memref<7xf32, #tpu.memory_space<smem>>
    %c6 = arith.constant 6 : index
    %6 = memref.load %arg1[%c6] : memref<7xf32, #tpu.memory_space<smem>>
    %c0_0 = arith.constant 0 : index
    %c0_1 = arith.constant 0 : index
    %7 = vector.load %arg2[%c0_0, %c0_1] : memref<128x512xf32, #tpu.memory_space<vmem>>, vector<128x512xf32>
    %8 = vector.broadcast %0 : f32 to vector<128x512xf32>
    %9 = arith.mulf %7, %8 : vector<128x512xf32>
    %10 = vector.broadcast %1 : f32 to vector<128x512xf32>
    %11 = arith.addf %9, %10 : vector<128x512xf32>
    %cst = arith.constant 0.000000e+00 : f32
    %12 = vector.broadcast %cst : f32 to vector<128x512xf32>
    %13 = arith.maximumf %11, %12 : vector<128x512xf32>
    %14 = vector.broadcast %2 : f32 to vector<128x512xf32>
    %15 = arith.mulf %13, %14 : vector<128x512xf32>
    %16 = vector.broadcast %3 : f32 to vector<128x512xf32>
    %17 = arith.mulf %7, %16 : vector<128x512xf32>
    %18 = vector.broadcast %4 : f32 to vector<128x512xf32>
    %19 = arith.addf %17, %18 : vector<128x512xf32>
    %cst_2 = arith.constant 0.000000e+00 : f32
    %20 = vector.broadcast %cst_2 : f32 to vector<128x512xf32>
    %21 = arith.maximumf %19, %20 : vector<128x512xf32>
    %22 = vector.broadcast %5 : f32 to vector<128x512xf32>
    %23 = arith.mulf %21, %22 : vector<128x512xf32>
    %24 = arith.addf %15, %23 : vector<128x512xf32>
    %25 = vector.broadcast %6 : f32 to vector<128x512xf32>
    %26 = arith.addf %24, %25 : vector<128x512xf32>
    %cst_3 = arith.constant 0.000000e+00 : f32
    %27 = vector.broadcast %cst_3 : f32 to vector<128x512xf32>
    %28 = arith.maximumf %26, %27 : vector<128x512xf32>
    %c0_4 = arith.constant 0 : index
    %c0_5 = arith.constant 0 : index
    %29 = vector.load %arg3[%c0_4, %c0_5] : memref<128x512xf32, #tpu.memory_space<vmem>>, vector<128x512xf32>
    tpu.vector_store %arg3[%c0_4, %c0_5], %28 {strides = array<i32>} : memref<128x512xf32, #tpu.memory_space<vmem>>, vector<128x512xf32>,
    return
  }
  func.func @transform_0(%arg0: i32) -> i32 {
    %c0_i32 = arith.constant 0 : i32
    %c0_i32_0 = arith.constant 0 : i32
    return %c0_i32 : i32
  }
  func.func @transform_1(%arg0: i32) -> (i32, i32) {
    %c0_i32 = arith.constant 0 : i32
    %c0_i32_0 = arith.constant 0 : i32
    return %arg0, %c0_i32 : i32, i32
  }
  func.func @transform_2(%arg0: i32) -> (i32, i32) {
    %c0_i32 = arith.constant 0 : i32
    %c0_i32_0 = arith.constant 0 : i32
    return %arg0, %c0_i32 : i32, i32
  }
}

</mosaic_0001>

<llo_original>
// kernel: tpu_custom_call.1
$region0: #{tpu_custom_call.1}
  #allocation0 [shape = 'u32[]', space=smem, size = 0x4, offset = 0x4, fixed_abs, tag = 'smem constant byte address 0x4 - core index']
  #allocation1 [shape = 'u32[144,128]{1,0:T(1,128)}', space=vmem, size = 0x12000, scoped, tag = 'internal scratch']
  %s0 = inlined_call_operand.hbm [shape: f32[7], index: 0, kind: input, shape index: {}]
  %s1 = inlined_call_operand.hbm [shape: f32[128,512], index: 1, kind: input, shape index: {}]
  %s2 = inlined_call_operand.hbm [shape: f32[128,512], index: 2, kind: output, shape index: {}]
  %s3 = sld [smem:[#allocation0]]
  $region26: #{tpu_custom_call.1} parent=0
    _
  %s5 = ssub.s32 1, %s3
  %s6 = scalar_select 0, %s5, %s3
  $region1: #{tpu_custom_call.1} parent=0
    #allocation2 [shape = 'u8[512]{0}', space=smem, size = 0x200, scoped, tag = 'input window, operand 0, single buffered']
    #allocation3 [shape = 's32[1]{0}', space=sflag, size = 0x4, scoped, tag = 'scoped memory for tpu_custom_call.1']
    #allocation4 [shape = 's32[1]{0}', space=sflag, size = 0x4, scoped, tag = 'scoped memory for tpu_custom_call.1']
    #allocation5 [shape = 's32[1]{0}', space=sflag, size = 0x4, scoped, tag = 'scoped memory for tpu_custom_call.1']
    #allocation6 [shape = 'u8[262144]{0}', space=vmem, size = 0x40000, scoped, tag = 'input window, operand 1, single buffered']
    #allocation7 [shape = 'u8[262144]{0}', space=vmem, size = 0x40000, scoped, tag = 'output window, operand 0, single buffered']
    %7 = vsyncpa [#allocation5], 0
    %8 = vsyncpa [#allocation3], 0
    %9 = vsyncpa [#allocation4], 0
    // Predicated region
    $region2: #{tpu_custom_call.1} parent=1 // pred_check
      _
    $region3: #{tpu_custom_call.1} parent=1 // pred_check_branch
      %11 = sbr.rel (0) target = $region5
    $region4: #{tpu_custom_call.1} parent=1 // pred_region
      %s13 = ssub.s32 16, 16
      %14 = vsyncadd [#allocation5], %s13
      %17 = dma.hbm_to_smem %s0, 16, [#allocation2], [#allocation5]
    $region5: #{tpu_custom_call.1} parent=1 // pred_fallthru
      _
    // Predicated region
    $region6: #{tpu_custom_call.1} parent=1 // pred_check
      _
    $region7: #{tpu_custom_call.1} parent=1 // pred_check_branch
      %19 = sbr.rel (0) target = $region9
    $region8: #{tpu_custom_call.1} parent=1 // pred_region
      %s21 = ssub.s32 8192, 8192
      %22 = vsyncadd [#allocation3], %s21
      %s23 = sshll.u32 [#allocation6], 4
      %s24 = int_to_ptr.vmem [resolvable:$true] %s23
      %29 = dma.hbm_to_vmem [thread:$0]  %s1, 8192, %s24, [#allocation3], 512, 512, 32
    $region9: #{tpu_custom_call.1} parent=1 // pred_fallthru
      _
    // Predicated region
    $region10: #{tpu_custom_call.1} parent=1 // pred_check
      _
    $region11: #{tpu_custom_call.1} parent=1 // pred_check_branch
      %31 = sbr.rel (0) target = $region13
    $region12: #{tpu_custom_call.1} parent=1 // pred_region
      %32 = dma.done [#allocation5], 16
    $region13: #{tpu_custom_call.1} parent=1 // pred_fallthru
      _
    // Predicated region
    $region14: #{tpu_custom_call.1} parent=1 // pred_check
      _
    $region15: #{tpu_custom_call.1} parent=1 // pred_check_branch
      %34 = sbr.rel (0) target = $region17
    $region16: #{tpu_custom_call.1} parent=1 // pred_region
      %35 = dma.done [#allocation3], 8192
    $region17: #{tpu_custom_call.1} parent=1 // pred_fallthru
      _
    %36 = sfence
    %s37 = sld [smem:[#allocation2]]
    %s38 = sld [smem:[#allocation2 + $0x1]]
    %s39 = sld [smem:[#allocation2 + $0x2]]
    %s40 = sld [smem:[#allocation2 + $0x3]]
    %s41 = sld [smem:[#allocation2 + $0x4]]
    %s42 = sld [smem:[#allocation2 + $0x5]]
    %s43 = sld [smem:[#allocation2 + $0x6]]
    %v44 = vld [vmem:[#allocation6] sm:$0xff]
    %v45 = vld [vmem:[#allocation6 + $0x8] sm:$0xff]
    %v46 = vld [vmem:[#allocation6 + $0x10] sm:$0xff]
    %v47 = vld [vmem:[#allocation6 + $0x18] sm:$0xff]
    %v48 = vld [vmem:[#allocation6 + $0x20] sm:$0xff]
    %v49 = vld [vmem:[#allocation6 + $0x28] sm:$0xff]
    %v50 = vld [vmem:[#allocation6 + $0x30] sm:$0xff]
    %v51 = vld [vmem:[#allocation6 + $0x38] sm:$0xff]
    %v52 = vld [vmem:[#allocation6 + $0x40] sm:$0xff]
    %v53 = vld [vmem:[#allocation6 + $0x48] sm:$0xff]
    %v54 = vld [vmem:[#allocation6 + $0x50] sm:$0xff]
    %v55 = vld [vmem:[#allocation6 + $0x58] sm:$0xff]
    %v56 = vld [vmem:[#allocation6 + $0x60] sm:$0xff]
    %v57 = vld [vmem:[#allocation6 + $0x68] sm:$0xff]
    %v58 = vld [vmem:[#allocation6 + $0x70] sm:$0xff]
    %v59 = vld [vmem:[#allocation6 + $0x78] sm:$0xff]
    %v60 = vld [vmem:[#allocation6 + $0x80] sm:$0xff]
    %v61 = vld [vmem:[#allocation6 + $0x88] sm:$0xff]
    %v62 = vld [vmem:[#allocation6 + $0x90] sm:$0xff]
    %v63 = vld [vmem:[#allocation6 + $0x98] sm:$0xff]
    %v64 = vld [vmem:[#allocation6 + $0xa0] sm:$0xff]
    %v65 = vld [vmem:[#allocation6 + $0xa8] sm:$0xff]
    %v66 = vld [vmem:[#allocation6 + $0xb0] sm:$0xff]
    %v67 = vld [vmem:[#allocation6 + $0xb8] sm:$0xff]
    %v68 = vld [vmem:[#allocation6 + $0xc0] sm:$0xff]
    %v69 = vld [vmem:[#allocation6 + $0xc8] sm:$0xff]
    %v70 = vld [vmem:[#allocation6 + $0xd0] sm:$0xff]
    %v71 = vld [vmem:[#allocation6 + $0xd8] sm:$0xff]
    %v72 = vld [vmem:[#allocation6 + $0xe0] sm:$0xff]
    %v73 = vld [vmem:[#allocation6 + $0xe8] sm:$0xff]
    %v74 = vld [vmem:[#allocation6 + $0xf0] sm:$0xff]
    %v75 = vld [vmem:[#allocation6 + $0xf8] sm:$0xff]
    %v76 = vld [vmem:[#allocation6 + $0x100] sm:$0xff]
    %v77 = vld [vmem:[#allocation6 + $0x108] sm:$0xff]
    %v78 = vld [vmem:[#allocation6 + $0x110] sm:$0xff]
    %v79 = vld [vmem:[#allocation6 + $0x118] sm:$0xff]
    %v80 = vld [vmem:[#allocation6 + $0x120] sm:$0xff]
    %v81 = vld [vmem:[#allocation6 + $0x128] sm:$0xff]
    %v82 = vld [vmem:[#allocation6 + $0x130] sm:$0xff]
    %v83 = vld [vmem:[#allocation6 + $0x138] sm:$0xff]
    %v84 = vld [vmem:[#allocation6 + $0x140] sm:$0xff]
    %v85 = vld [vmem:[#allocation6 + $0x148] sm:$0xff]
    %v86 = vld [vmem:[#allocation6 + $0x150] sm:$0xff]
    %v87 = vld [vmem:[#allocation6 + $0x158] sm:$0xff]
    %v88 = vld [vmem:[#allocation6 + $0x160] sm:$0xff]
    %v89 = vld [vmem:[#allocation6 + $0x168] sm:$0xff]
    %v90 = vld [vmem:[#allocation6 + $0x170] sm:$0xff]
    %v91 = vld [vmem:[#allocation6 + $0x178] sm:$0xff]
    %v92 = vld [vmem:[#allocation6 + $0x180] sm:$0xff]
    %v93 = vld [vmem:[#allocation6 + $0x188] sm:$0xff]
    %v94 = vld [vmem:[#allocation6 + $0x190] sm:$0xff]
    %v95 = vld [vmem:[#allocation6 + $0x198] sm:$0xff]
    %v96 = vld [vmem:[#allocation6 + $0x1a0] sm:$0xff]
    %v97 = vld [vmem:[#allocation6 + $0x1a8] sm:$0xff]
    %v98 = vld [vmem:[#allocation6 + $0x1b0] sm:$0xff]
    %v99 = vld [vmem:[#allocation6 + $0x1b8] sm:$0xff]
    %v100 = vld [vmem:[#allocation6 + $0x1c0] sm:$0xff]
    %v101 = vld [vmem:[#allocation6 + $0x1c8] sm:$0xff]
    %v102 = vld [vmem:[#allocation6 + $0x1d0] sm:$0xff]
    %v103 = vld [vmem:[#allocation6 + $0x1d8] sm:$0xff]
    %v104 = vld [vmem:[#allocation6 + $0x1e0] sm:$0xff]
    %v105 = vld [vmem:[#allocation6 + $0x1e8] sm:$0xff]
    %v106 = vld [vmem:[#allocation6 + $0x1f0] sm:$0xff]
    %v107 = vld [vmem:[#allocation6 + $0x1f8] sm:$0xff]
    %v108 = vstv %s37
    %v109 = vmul.f32 %v44, %v108
    %v110 = vmul.f32 %v45, %v108
    %v111 = vmul.f32 %v46, %v108
    %v112 = vmul.f32 %v47, %v108
    %v113 = vmul.f32 %v48, %v108
    %v114 = vmul.f32 %v49, %v108
    %v115 = vmul.f32 %v50, %v108
    %v116 = vmul.f32 %v51, %v108
    %v117 = vmul.f32 %v52, %v108
    %v118 = vmul.f32 %v53, %v108
    %v119 = vmul.f32 %v54, %v108
    %v120 = vmul.f32 %v55, %v108
    %v121 = vmul.f32 %v56, %v108
    %v122 = vmul.f32 %v57, %v108
    %v123 = vmul.f32 %v58, %v108
    %v124 = vmul.f32 %v59, %v108
    %v125 = vmul.f32 %v60, %v108
    %v126 = vmul.f32 %v61, %v108
    %v127 = vmul.f32 %v62, %v108
    %v128 = vmul.f32 %v63, %v108
    %v129 = vmul.f32 %v64, %v108
    %v130 = vmul.f32 %v65, %v108
    %v131 = vmul.f32 %v66, %v108
    %v132 = vmul.f32 %v67, %v108
    %v133 = vmul.f32 %v68, %v108
    %v134 = vmul.f32 %v69, %v108
    %v135 = vmul.f32 %v70, %v108
    %v136 = vmul.f32 %v71, %v108
    %v137 = vmul.f32 %v72, %v108
    %v138 = vmul.f32 %v73, %v108
    %v139 = vmul.f32 %v74, %v108
    %v140 = vmul.f32 %v75, %v108
    %v141 = vmul.f32 %v76, %v108
    %v142 = vmul.f32 %v77, %v108
    %v143 = vmul.f32 %v78, %v108
    %v144 = vmul.f32 %v79, %v108
    %v145 = vmul.f32 %v80, %v108
    %v146 = vmul.f32 %v81, %v108
    %v147 = vmul.f32 %v82, %v108
    %v148 = vmul.f32 %v83, %v108
    %v149 = vmul.f32 %v84, %v108
    %v150 = vmul.f32 %v85, %v108
    %v151 = vmul.f32 %v86, %v108
    %v152 = vmul.f32 %v87, %v108
    %v153 = vmul.f32 %v88, %v108
    %v154 = vmul.f32 %v89, %v108
    %v155 = vmul.f32 %v90, %v108
    %v156 = vmul.f32 %v91, %v108
    %v157 = vmul.f32 %v92, %v108
    %v158 = vmul.f32 %v93, %v108
    %v159 = vmul.f32 %v94, %v108
    %v160 = vmul.f32 %v95, %v108
    %v161 = vmul.f32 %v96, %v108
    %v162 = vmul.f32 %v97, %v108
    %v163 = vmul.f32 %v98, %v108
    %v164 = vmul.f32 %v99, %v108
    %v165 = vmul.f32 %v100, %v108
    %v166 = vmul.f32 %v101, %v108
    %v167 = vmul.f32 %v102, %v108
    %v168 = vmul.f32 %v103, %v108
    %v169 = vmul.f32 %v104, %v108
    %v170 = vmul.f32 %v105, %v108
    %v171 = vmul.f32 %v106, %v108
    %v172 = vmul.f32 %v107, %v108
    %v173 = vstv %s38
    %v174 = vadd.f32 %v109, %v173
    %v175 = vadd.f32 %v110, %v173
    %v176 = vadd.f32 %v111, %v173
    %v177 = vadd.f32 %v112, %v173
    %v178 = vadd.f32 %v113, %v173
    %v179 = vadd.f32 %v114, %v173
    %v180 = vadd.f32 %v115, %v173
    %v181 = vadd.f32 %v116, %v173
    %v182 = vadd.f32 %v117, %v173
    %v183 = vadd.f32 %v118, %v173
    %v184 = vadd.f32 %v119, %v173
    %v185 = vadd.f32 %v120, %v173
    %v186 = vadd.f32 %v121, %v173
    %v187 = vadd.f32 %v122, %v173
    %v188 = vadd.f32 %v123, %v173
    %v189 = vadd.f32 %v124, %v173
    %v190 = vadd.f32 %v125, %v173
    %v191 = vadd.f32 %v126, %v173
    %v192 = vadd.f32 %v127, %v173
    %v193 = vadd.f32 %v128, %v173
    %v194 = vadd.f32 %v129, %v173
    %v195 = vadd.f32 %v130, %v173
    %v196 = vadd.f32 %v131, %v173
    %v197 = vadd.f32 %v132, %v173
    %v198 = vadd.f32 %v133, %v173
    %v199 = vadd.f32 %v134, %v173
    %v200 = vadd.f32 %v135, %v173
    %v201 = vadd.f32 %v136, %v173
    %v202 = vadd.f32 %v137, %v173
    %v203 = vadd.f32 %v138, %v173
    %v204 = vadd.f32 %v139, %v173
    %v205 = vadd.f32 %v140, %v173
    %v206 = vadd.f32 %v141, %v173
    %v207 = vadd.f32 %v142, %v173
    %v208 = vadd.f32 %v143, %v173
    %v209 = vadd.f32 %v144, %v173
    %v210 = vadd.f32 %v145, %v173
    %v211 = vadd.f32 %v146, %v173
    %v212 = vadd.f32 %v147, %v173
    %v213 = vadd.f32 %v148, %v173
    %v214 = vadd.f32 %v149, %v173
    %v215 = vadd.f32 %v150, %v173
    %v216 = vadd.f32 %v151, %v173
    %v217 = vadd.f32 %v152, %v173
    %v218 = vadd.f32 %v153, %v173
    %v219 = vadd.f32 %v154, %v173
    %v220 = vadd.f32 %v155, %v173
    %v221 = vadd.f32 %v156, %v173
    %v222 = vadd.f32 %v157, %v173
    %v223 = vadd.f32 %v158, %v173
    %v224 = vadd.f32 %v159, %v173
    %v225 = vadd.f32 %v160, %v173
    %v226 = vadd.f32 %v161, %v173
    %v227 = vadd.f32 %v162, %v173
    %v228 = vadd.f32 %v163, %v173
    %v229 = vadd.f32 %v164, %v173
    %v230 = vadd.f32 %v165, %v173
    %v231 = vadd.f32 %v166, %v173
    %v232 = vadd.f32 %v167, %v173
    %v233 = vadd.f32 %v168, %v173
    %v234 = vadd.f32 %v169, %v173
    %v235 = vadd.f32 %v170, %v173
    %v236 = vadd.f32 %v171, %v173
    %v237 = vadd.f32 %v172, %v173
    %v238 = vmax.f32 %v174, 0.0
    %v239 = vmax.f32 %v175, 0.0
    %v240 = vmax.f32 %v176, 0.0
    %v241 = vmax.f32 %v177, 0.0
    %v242 = vmax.f32 %v178, 0.0
    %v243 = vmax.f32 %v179, 0.0
    %v244 = vmax.f32 %v180, 0.0
    %v245 = vmax.f32 %v181, 0.0
    %v246 = vmax.f32 %v182, 0.0
    %v247 = vmax.f32 %v183, 0.0
    %v248 = vmax.f32 %v184, 0.0
    %v249 = vmax.f32 %v185, 0.0
    %v250 = vmax.f32 %v186, 0.0
    %v251 = vmax.f32 %v187, 0.0
    %v252 = vmax.f32 %v188, 0.0
    %v253 = vmax.f32 %v189, 0.0
    %v254 = vmax.f32 %v190, 0.0
    %v255 = vmax.f32 %v191, 0.0
    %v256 = vmax.f32 %v192, 0.0
    %v257 = vmax.f32 %v193, 0.0
    %v258 = vmax.f32 %v194, 0.0
    %v259 = vmax.f32 %v195, 0.0
    %v260 = vmax.f32 %v196, 0.0
    %v261 = vmax.f32 %v197, 0.0
    %v262 = vmax.f32 %v198, 0.0
    %v263 = vmax.f32 %v199, 0.0
    %v264 = vmax.f32 %v200, 0.0
    %v265 = vmax.f32 %v201, 0.0
    %v266 = vmax.f32 %v202, 0.0
    %v267 = vmax.f32 %v203, 0.0
    %v268 = vmax.f32 %v204, 0.0
    %v269 = vmax.f32 %v205, 0.0
    %v270 = vmax.f32 %v206, 0.0
    %v271 = vmax.f32 %v207, 0.0
    %v272 = vmax.f32 %v208, 0.0
    %v273 = vmax.f32 %v209, 0.0
    %v274 = vmax.f32 %v210, 0.0
    %v275 = vmax.f32 %v211, 0.0
    %v276 = vmax.f32 %v212, 0.0
    %v277 = vmax.f32 %v213, 0.0
    %v278 = vmax.f32 %v214, 0.0
    %v279 = vmax.f32 %v215, 0.0
    %v280 = vmax.f32 %v216, 0.0
    %v281 = vmax.f32 %v217, 0.0
    %v282 = vmax.f32 %v218, 0.0
    %v283 = vmax.f32 %v219, 0.0
    %v284 = vmax.f32 %v220, 0.0
    %v285 = vmax.f32 %v221, 0.0
    %v286 = vmax.f32 %v222, 0.0
    %v287 = vmax.f32 %v223, 0.0
    %v288 = vmax.f32 %v224, 0.0
    %v289 = vmax.f32 %v225, 0.0
    %v290 = vmax.f32 %v226, 0.0
    %v291 = vmax.f32 %v227, 0.0
    %v292 = vmax.f32 %v228, 0.0
    %v293 = vmax.f32 %v229, 0.0
    %v294 = vmax.f32 %v230, 0.0
    %v295 = vmax.f32 %v231, 0.0
    %v296 = vmax.f32 %v232, 0.0
    %v297 = vmax.f32 %v233, 0.0
    %v298 = vmax.f32 %v234, 0.0
    %v299 = vmax.f32 %v235, 0.0
    %v300 = vmax.f32 %v236, 0.0
    %v301 = vmax.f32 %v237, 0.0
    %v302 = vstv %s39
    %v303 = vmul.f32 %v238, %v302
    %v304 = vmul.f32 %v239, %v302
    %v305 = vmul.f32 %v240, %v302
    %v306 = vmul.f32 %v241, %v302
    %v307 = vmul.f32 %v242, %v302
    %v308 = vmul.f32 %v243, %v302
    %v309 = vmul.f32 %v244, %v302
    %v310 = vmul.f32 %v245, %v302
    %v311 = vmul.f32 %v246, %v302
    %v312 = vmul.f32 %v247, %v302
    %v313 = vmul.f32 %v248, %v302
    %v314 = vmul.f32 %v249, %v302
    %v315 = vmul.f32 %v250, %v302
    %v316 = vmul.f32 %v251, %v302
    %v317 = vmul.f32 %v252, %v302
    %v318 = vmul.f32 %v253, %v302
    %v319 = vmul.f32 %v254, %v302
    %v320 = vmul.f32 %v255, %v302
    %v321 = vmul.f32 %v256, %v302
    %v322 = vmul.f32 %v257, %v302
    %v323 = vmul.f32 %v258, %v302
    %v324 = vmul.f32 %v259, %v302
    %v325 = vmul.f32 %v260, %v302
    %v326 = vmul.f32 %v261, %v302
    %v327 = vmul.f32 %v262, %v302
    %v328 = vmul.f32 %v263, %v302
    %v329 = vmul.f32 %v264, %v302
    %v330 = vmul.f32 %v265, %v302
    %v331 = vmul.f32 %v266, %v302
    %v332 = vmul.f32 %v267, %v302
    %v333 = vmul.f32 %v268, %v302
    %v334 = vmul.f32 %v269, %v302
    %v335 = vmul.f32 %v270, %v302
    %v336 = vmul.f32 %v271, %v302
    %v337 = vmul.f32 %v272, %v302
    %v338 = vmul.f32 %v273, %v302
    %v339 = vmul.f32 %v274, %v302
    %v340 = vmul.f32 %v275, %v302
    %v341 = vmul.f32 %v276, %v302
    %v342 = vmul.f32 %v277, %v302
    %v343 = vmul.f32 %v278, %v302
    %v344 = vmul.f32 %v279, %v302
    %v345 = vmul.f32 %v280, %v302
    %v346 = vmul.f32 %v281, %v302
    %v347 = vmul.f32 %v282, %v302
    %v348 = vmul.f32 %v283, %v302
    %v349 = vmul.f32 %v284, %v302
    %v350 = vmul.f32 %v285, %v302
    %v351 = vmul.f32 %v286, %v302
    %v352 = vmul.f32 %v287, %v302
    %v353 = vmul.f32 %v288, %v302
    %v354 = vmul.f32 %v289, %v302
    %v355 = vmul.f32 %v290, %v302
    %v356 = vmul.f32 %v291, %v302
    %v357 = vmul.f32 %v292, %v302
    %v358 = vmul.f32 %v293, %v302
    %v359 = vmul.f32 %v294, %v302
    %v360 = vmul.f32 %v295, %v302
    %v361 = vmul.f32 %v296, %v302
    %v362 = vmul.f32 %v297, %v302
    %v363 = vmul.f32 %v298, %v302
    %v364 = vmul.f32 %v299, %v302
    %v365 = vmul.f32 %v300, %v302
    %v366 = vmul.f32 %v301, %v302
    %v367 = vstv %s40
    %v368 = vmul.f32 %v44, %v367
    %v369 = vmul.f32 %v45, %v367
    %v370 = vmul.f32 %v46, %v367
    %v371 = vmul.f32 %v47, %v367
    %v372 = vmul.f32 %v48, %v367
    %v373 = vmul.f32 %v49, %v367
    %v374 = vmul.f32 %v50, %v367
    %v375 = vmul.f32 %v51, %v367
    %v376 = vmul.f32 %v52, %v367
    %v377 = vmul.f32 %v53, %v367
    %v378 = vmul.f32 %v54, %v367
    %v379 = vmul.f32 %v55, %v367
    %v380 = vmul.f32 %v56, %v367
    %v381 = vmul.f32 %v57, %v367
    %v382 = vmul.f32 %v58, %v367
    %v383 = vmul.f32 %v59, %v367
    %v384 = vmul.f32 %v60, %v367
    %v385 = vmul.f32 %v61, %v367
    %v386 = vmul.f32 %v62, %v367
    %v387 = vmul.f32 %v63, %v367
    %v388 = vmul.f32 %v64, %v367
    %v389 = vmul.f32 %v65, %v367
    %v390 = vmul.f32 %v66, %v367
    %v391 = vmul.f32 %v67, %v367
    %v392 = vmul.f32 %v68, %v367
    %v393 = vmul.f32 %v69, %v367
    %v394 = vmul.f32 %v70, %v367
    %v395 = vmul.f32 %v71, %v367
    %v396 = vmul.f32 %v72, %v367
    %v397 = vmul.f32 %v73, %v367
    %v398 = vmul.f32 %v74, %v367
    %v399 = vmul.f32 %v75, %v367
    %v400 = vmul.f32 %v76, %v367
    %v401 = vmul.f32 %v77, %v367
    %v402 = vmul.f32 %v78, %v367
    %v403 = vmul.f32 %v79, %v367
    %v404 = vmul.f32 %v80, %v367
    %v405 = vmul.f32 %v81, %v367
    %v406 = vmul.f32 %v82, %v367
    %v407 = vmul.f32 %v83, %v367
    %v408 = vmul.f32 %v84, %v367
    %v409 = vmul.f32 %v85, %v367
    %v410 = vmul.f32 %v86, %v367
    %v411 = vmul.f32 %v87, %v367
    %v412 = vmul.f32 %v88, %v367
    %v413 = vmul.f32 %v89, %v367
    %v414 = vmul.f32 %v90, %v367
    %v415 = vmul.f32 %v91, %v367
    %v416 = vmul.f32 %v92, %v367
    %v417 = vmul.f32 %v93, %v367
    %v418 = vmul.f32 %v94, %v367
    %v419 = vmul.f32 %v95, %v367
    %v420 = vmul.f32 %v96, %v367
    %v421 = vmul.f32 %v97, %v367
    %v422 = vmul.f32 %v98, %v367
    %v423 = vmul.f32 %v99, %v367
    %v424 = vmul.f32 %v100, %v367
    %v425 = vmul.f32 %v101, %v367
    %v426 = vmul.f32 %v102, %v367
    %v427 = vmul.f32 %v103, %v367
    %v428 = vmul.f32 %v104, %v367
    %v429 = vmul.f32 %v105, %v367
    %v430 = vmul.f32 %v106, %v367
    %v431 = vmul.f32 %v107, %v367
    %v432 = vstv %s41
    %v433 = vadd.f32 %v368, %v432
    %v434 = vadd.f32 %v369, %v432
    %v435 = vadd.f32 %v370, %v432
    %v436 = vadd.f32 %v371, %v432
    %v437 = vadd.f32 %v372, %v432
    %v438 = vadd.f32 %v373, %v432
    %v439 = vadd.f32 %v374, %v432
    %v440 = vadd.f32 %v375, %v432
    %v441 = vadd.f32 %v376, %v432
    %v442 = vadd.f32 %v377, %v432
    %v443 = vadd.f32 %v378, %v432
    %v444 = vadd.f32 %v379, %v432
    %v445 = vadd.f32 %v380, %v432
    %v446 = vadd.f32 %v381, %v432
    %v447 = vadd.f32 %v382, %v432
    %v448 = vadd.f32 %v383, %v432
    %v449 = vadd.f32 %v384, %v432
    %v450 = vadd.f32 %v385, %v432
    %v451 = vadd.f32 %v386, %v432
    %v452 = vadd.f32 %v387, %v432
    %v453 = vadd.f32 %v388, %v432
    %v454 = vadd.f32 %v389, %v432
    %v455 = vadd.f32 %v390, %v432
    %v456 = vadd.f32 %v391, %v432
    %v457 = vadd.f32 %v392, %v432
    %v458 = vadd.f32 %v393, %v432
    %v459 = vadd.f32 %v394, %v432
    %v460 = vadd.f32 %v395, %v432
    %v461 = vadd.f32 %v396, %v432
    %v462 = vadd.f32 %v397, %v432
    %v463 = vadd.f32 %v398, %v432
    %v464 = vadd.f32 %v399, %v432
    %v465 = vadd.f32 %v400, %v432
    %v466 = vadd.f32 %v401, %v432
    %v467 = vadd.f32 %v402, %v432
    %v468 = vadd.f32 %v403, %v432
    %v469 = vadd.f32 %v404, %v432
    %v470 = vadd.f32 %v405, %v432
    %v471 = vadd.f32 %v406, %v432
    %v472 = vadd.f32 %v407, %v432
    %v473 = vadd.f32 %v408, %v432
    %v474 = vadd.f32 %v409, %v432
    %v475 = vadd.f32 %v410, %v432
    %v476 = vadd.f32 %v411, %v432
    %v477 = vadd.f32 %v412, %v432
    %v478 = vadd.f32 %v413, %v432
    %v479 = vadd.f32 %v414, %v432
    %v480 = vadd.f32 %v415, %v432
    %v481 = vadd.f32 %v416, %v432
    %v482 = vadd.f32 %v417, %v432
    %v483 = vadd.f32 %v418, %v432
    %v484 = vadd.f32 %v419, %v432
    %v485 = vadd.f32 %v420, %v432
    %v486 = vadd.f32 %v421, %v432
    %v487 = vadd.f32 %v422, %v432
    %v488 = vadd.f32 %v423, %v432
    %v489 = vadd.f32 %v424, %v432
    %v490 = vadd.f32 %v425, %v432
    %v491 = vadd.f32 %v426, %v432
    %v492 = vadd.f32 %v427, %v432
    %v493 = vadd.f32 %v428, %v432
    %v494 = vadd.f32 %v429, %v432
    %v495 = vadd.f32 %v430, %v432
    %v496 = vadd.f32 %v431, %v432
    %v497 = vmax.f32 %v433, 0.0
    %v498 = vmax.f32 %v434, 0.0
    %v499 = vmax.f32 %v435, 0.0
    %v500 = vmax.f32 %v436, 0.0
    %v501 = vmax.f32 %v437, 0.0
    %v502 = vmax.f32 %v438, 0.0
    %v503 = vmax.f32 %v439, 0.0
    %v504 = vmax.f32 %v440, 0.0
    %v505 = vmax.f32 %v441, 0.0
    %v506 = vmax.f32 %v442, 0.0
    %v507 = vmax.f32 %v443, 0.0
    %v508 = vmax.f32 %v444, 0.0
    %v509 = vmax.f32 %v445, 0.0
    %v510 = vmax.f32 %v446, 0.0
    %v511 = vmax.f32 %v447, 0.0
    %v512 = vmax.f32 %v448, 0.0
    %v513 = vmax.f32 %v449, 0.0
    %v514 = vmax.f32 %v450, 0.0
    %v515 = vmax.f32 %v451, 0.0
    %v516 = vmax.f32 %v452, 0.0
    %v517 = vmax.f32 %v453, 0.0
    %v518 = vmax.f32 %v454, 0.0
    %v519 = vmax.f32 %v455, 0.0
    %v520 = vmax.f32 %v456, 0.0
    %v521 = vmax.f32 %v457, 0.0
    %v522 = vmax.f32 %v458, 0.0
    %v523 = vmax.f32 %v459, 0.0
    %v524 = vmax.f32 %v460, 0.0
    %v525 = vmax.f32 %v461, 0.0
    %v526 = vmax.f32 %v462, 0.0
    %v527 = vmax.f32 %v463, 0.0
    %v528 = vmax.f32 %v464, 0.0
    %v529 = vmax.f32 %v465, 0.0
    %v530 = vmax.f32 %v466, 0.0
    %v531 = vmax.f32 %v467, 0.0
    %v532 = vmax.f32 %v468, 0.0
    %v533 = vmax.f32 %v469, 0.0
    %v534 = vmax.f32 %v470, 0.0
    %v535 = vmax.f32 %v471, 0.0
    %v536 = vmax.f32 %v472, 0.0
    %v537 = vmax.f32 %v473, 0.0
    %v538 = vmax.f32 %v474, 0.0
    %v539 = vmax.f32 %v475, 0.0
    %v540 = vmax.f32 %v476, 0.0
    %v541 = vmax.f32 %v477, 0.0
    %v542 = vmax.f32 %v478, 0.0
    %v543 = vmax.f32 %v479, 0.0
    %v544 = vmax.f32 %v480, 0.0
    %v545 = vmax.f32 %v481, 0.0
    %v546 = vmax.f32 %v482, 0.0
    %v547 = vmax.f32 %v483, 0.0
    %v548 = vmax.f32 %v484, 0.0
    %v549 = vmax.f32 %v485, 0.0
    %v550 = vmax.f32 %v486, 0.0
    %v551 = vmax.f32 %v487, 0.0
    %v552 = vmax.f32 %v488, 0.0
    %v553 = vmax.f32 %v489, 0.0
    %v554 = vmax.f32 %v490, 0.0
    %v555 = vmax.f32 %v491, 0.0
    %v556 = vmax.f32 %v492, 0.0
    %v557 = vmax.f32 %v493, 0.0
    %v558 = vmax.f32 %v494, 0.0
    %v559 = vmax.f32 %v495, 0.0
    %v560 = vmax.f32 %v496, 0.0
    %v561 = vstv %s42
    %v562 = vmul.f32 %v497, %v561
    %v563 = vmul.f32 %v498, %v561
    %v564 = vmul.f32 %v499, %v561
    %v565 = vmul.f32 %v500, %v561
    %v566 = vmul.f32 %v501, %v561
    %v567 = vmul.f32 %v502, %v561
    %v568 = vmul.f32 %v503, %v561
    %v569 = vmul.f32 %v504, %v561
    %v570 = vmul.f32 %v505, %v561
    %v571 = vmul.f32 %v506, %v561
    %v572 = vmul.f32 %v507, %v561
    %v573 = vmul.f32 %v508, %v561
    %v574 = vmul.f32 %v509, %v561
    %v575 = vmul.f32 %v510, %v561
    %v576 = vmul.f32 %v511, %v561
    %v577 = vmul.f32 %v512, %v561
    %v578 = vmul.f32 %v513, %v561
    %v579 = vmul.f32 %v514, %v561
    %v580 = vmul.f32 %v515, %v561
    %v581 = vmul.f32 %v516, %v561
    %v582 = vmul.f32 %v517, %v561
    %v583 = vmul.f32 %v518, %v561
    %v584 = vmul.f32 %v519, %v561
    %v585 = vmul.f32 %v520, %v561
    %v586 = vmul.f32 %v521, %v561
    %v587 = vmul.f32 %v522, %v561
    %v588 = vmul.f32 %v523, %v561
    %v589 = vmul.f32 %v524, %v561
    %v590 = vmul.f32 %v525, %v561
    %v591 = vmul.f32 %v526, %v561
    %v592 = vmul.f32 %v527, %v561
    %v593 = vmul.f32 %v528, %v561
    %v594 = vmul.f32 %v529, %v561
    %v595 = vmul.f32 %v530, %v561
    %v596 = vmul.f32 %v531, %v561
    %v597 = vmul.f32 %v532, %v561
    %v598 = vmul.f32 %v533, %v561
    %v599 = vmul.f32 %v534, %v561
    %v600 = vmul.f32 %v535, %v561
    %v601 = vmul.f32 %v536, %v561
    %v602 = vmul.f32 %v537, %v561
    %v603 = vmul.f32 %v538, %v561
    %v604 = vmul.f32 %v539, %v561
    %v605 = vmul.f32 %v540, %v561
    %v606 = vmul.f32 %v541, %v561
    %v607 = vmul.f32 %v542, %v561
    %v608 = vmul.f32 %v543, %v561
    %v609 = vmul.f32 %v544, %v561
    %v610 = vmul.f32 %v545, %v561
    %v611 = vmul.f32 %v546, %v561
    %v612 = vmul.f32 %v547, %v561
    %v613 = vmul.f32 %v548, %v561
    %v614 = vmul.f32 %v549, %v561
    %v615 = vmul.f32 %v550, %v561
    %v616 = vmul.f32 %v551, %v561
    %v617 = vmul.f32 %v552, %v561
    %v618 = vmul.f32 %v553, %v561
    %v619 = vmul.f32 %v554, %v561
    %v620 = vmul.f32 %v555, %v561
    %v621 = vmul.f32 %v556, %v561
    %v622 = vmul.f32 %v557, %v561
    %v623 = vmul.f32 %v558, %v561
    %v624 = vmul.f32 %v559, %v561
    %v625 = vmul.f32 %v560, %v561
    %v626 = vadd.f32 %v303, %v562
    %v627 = vadd.f32 %v304, %v563
    %v628 = vadd.f32 %v305, %v564
    %v629 = vadd.f32 %v306, %v565
    %v630 = vadd.f32 %v307, %v566
    %v631 = vadd.f32 %v308, %v567
    %v632 = vadd.f32 %v309, %v568
    %v633 = vadd.f32 %v310, %v569
    %v634 = vadd.f32 %v311, %v570
    %v635 = vadd.f32 %v312, %v571
    %v636 = vadd.f32 %v313, %v572
    %v637 = vadd.f32 %v314, %v573
    %v638 = vadd.f32 %v315, %v574
    %v639 = vadd.f32 %v316, %v575
    %v640 = vadd.f32 %v317, %v576
    %v641 = vadd.f32 %v318, %v577
    %v642 = vadd.f32 %v319, %v578
    %v643 = vadd.f32 %v320, %v579
    %v644 = vadd.f32 %v321, %v580
    %v645 = vadd.f32 %v322, %v581
    %v646 = vadd.f32 %v323, %v582
    %v647 = vadd.f32 %v324, %v583
    %v648 = vadd.f32 %v325, %v584
    %v649 = vadd.f32 %v326, %v585
    %v650 = vadd.f32 %v327, %v586
    %v651 = vadd.f32 %v328, %v587
    %v652 = vadd.f32 %v329, %v588
    %v653 = vadd.f32 %v330, %v589
    %v654 = vadd.f32 %v331, %v590
    %v655 = vadd.f32 %v332, %v591
    %v656 = vadd.f32 %v333, %v592
    %v657 = vadd.f32 %v334, %v593
    %v658 = vadd.f32 %v335, %v594
    %v659 = vadd.f32 %v336, %v595
    %v660 = vadd.f32 %v337, %v596
    %v661 = vadd.f32 %v338, %v597
    %v662 = vadd.f32 %v339, %v598
    %v663 = vadd.f32 %v340, %v599
    %v664 = vadd.f32 %v341, %v600
    %v665 = vadd.f32 %v342, %v601
    %v666 = vadd.f32 %v343, %v602
    %v667 = vadd.f32 %v344, %v603
    %v668 = vadd.f32 %v345, %v604
    %v669 = vadd.f32 %v346, %v605
    %v670 = vadd.f32 %v347, %v606
    %v671 = vadd.f32 %v348, %v607
    %v672 = vadd.f32 %v349, %v608
    %v673 = vadd.f32 %v350, %v609
    %v674 = vadd.f32 %v351, %v610
    %v675 = vadd.f32 %v352, %v611
    %v676 = vadd.f32 %v353, %v612
    %v677 = vadd.f32 %v354, %v613
    %v678 = vadd.f32 %v355, %v614
    %v679 = vadd.f32 %v356, %v615
    %v680 = vadd.f32 %v357, %v616
    %v681 = vadd.f32 %v358, %v617
    %v682 = vadd.f32 %v359, %v618
    %v683 = vadd.f32 %v360, %v619
    %v684 = vadd.f32 %v361, %v620
    %v685 = vadd.f32 %v362, %v621
    %v686 = vadd.f32 %v363, %v622
    %v687 = vadd.f32 %v364, %v623
    %v688 = vadd.f32 %v365, %v624
    %v689 = vadd.f32 %v366, %v625
    %v690 = vstv %s43
    %v691 = vadd.f32 %v626, %v690
    %v692 = vadd.f32 %v627, %v690
    %v693 = vadd.f32 %v628, %v690
    %v694 = vadd.f32 %v629, %v690
    %v695 = vadd.f32 %v630, %v690
    %v696 = vadd.f32 %v631, %v690
    %v697 = vadd.f32 %v632, %v690
    %v698 = vadd.f32 %v633, %v690
    %v699 = vadd.f32 %v634, %v690
    %v700 = vadd.f32 %v635, %v690
    %v701 = vadd.f32 %v636, %v690
    %v702 = vadd.f32 %v637, %v690
    %v703 = vadd.f32 %v638, %v690
    %v704 = vadd.f32 %v639, %v690
    %v705 = vadd.f32 %v640, %v690
    %v706 = vadd.f32 %v641, %v690
    %v707 = vadd.f32 %v642, %v690
    %v708 = vadd.f32 %v643, %v690
    %v709 = vadd.f32 %v644, %v690
    %v710 = vadd.f32 %v645, %v690
    %v711 = vadd.f32 %v646, %v690
    %v712 = vadd.f32 %v647, %v690
    %v713 = vadd.f32 %v648, %v690
    %v714 = vadd.f32 %v649, %v690
    %v715 = vadd.f32 %v650, %v690
    %v716 = vadd.f32 %v651, %v690
    %v717 = vadd.f32 %v652, %v690
    %v718 = vadd.f32 %v653, %v690
    %v719 = vadd.f32 %v654, %v690
    %v720 = vadd.f32 %v655, %v690
    %v721 = vadd.f32 %v656, %v690
    %v722 = vadd.f32 %v657, %v690
    %v723 = vadd.f32 %v658, %v690
    %v724 = vadd.f32 %v659, %v690
    %v725 = vadd.f32 %v660, %v690
    %v726 = vadd.f32 %v661, %v690
    %v727 = vadd.f32 %v662, %v690
    %v728 = vadd.f32 %v663, %v690
    %v729 = vadd.f32 %v664, %v690
    %v730 = vadd.f32 %v665, %v690
    %v731 = vadd.f32 %v666, %v690
    %v732 = vadd.f32 %v667, %v690
    %v733 = vadd.f32 %v668, %v690
    %v734 = vadd.f32 %v669, %v690
    %v735 = vadd.f32 %v670, %v690
    %v736 = vadd.f32 %v671, %v690
    %v737 = vadd.f32 %v672, %v690
    %v738 = vadd.f32 %v673, %v690
    %v739 = vadd.f32 %v674, %v690
    %v740 = vadd.f32 %v675, %v690
    %v741 = vadd.f32 %v676, %v690
    %v742 = vadd.f32 %v677, %v690
    %v743 = vadd.f32 %v678, %v690
    %v744 = vadd.f32 %v679, %v690
    %v745 = vadd.f32 %v680, %v690
    %v746 = vadd.f32 %v681, %v690
    %v747 = vadd.f32 %v682, %v690
    %v748 = vadd.f32 %v683, %v690
    %v749 = vadd.f32 %v684, %v690
    %v750 = vadd.f32 %v685, %v690
    %v751 = vadd.f32 %v686, %v690
    %v752 = vadd.f32 %v687, %v690
    %v753 = vadd.f32 %v688, %v690
    %v754 = vadd.f32 %v689, %v690
    %v755 = vmax.f32 %v691, 0.0
    %v756 = vmax.f32 %v692, 0.0
    %v757 = vmax.f32 %v693, 0.0
    %v758 = vmax.f32 %v694, 0.0
    %v759 = vmax.f32 %v695, 0.0
    %v760 = vmax.f32 %v696, 0.0
    %v761 = vmax.f32 %v697, 0.0
    %v762 = vmax.f32 %v698, 0.0
    %v763 = vmax.f32 %v699, 0.0
    %v764 = vmax.f32 %v700, 0.0
    %v765 = vmax.f32 %v701, 0.0
    %v766 = vmax.f32 %v702, 0.0
    %v767 = vmax.f32 %v703, 0.0
    %v768 = vmax.f32 %v704, 0.0
    %v769 = vmax.f32 %v705, 0.0
    %v770 = vmax.f32 %v706, 0.0
    %v771 = vmax.f32 %v707, 0.0
    %v772 = vmax.f32 %v708, 0.0
    %v773 = vmax.f32 %v709, 0.0
    %v774 = vmax.f32 %v710, 0.0
    %v775 = vmax.f32 %v711, 0.0
    %v776 = vmax.f32 %v712, 0.0
    %v777 = vmax.f32 %v713, 0.0
    %v778 = vmax.f32 %v714, 0.0
    %v779 = vmax.f32 %v715, 0.0
    %v780 = vmax.f32 %v716, 0.0
    %v781 = vmax.f32 %v717, 0.0
    %v782 = vmax.f32 %v718, 0.0
    %v783 = vmax.f32 %v719, 0.0
    %v784 = vmax.f32 %v720, 0.0
    %v785 = vmax.f32 %v721, 0.0
    %v786 = vmax.f32 %v722, 0.0
    %v787 = vmax.f32 %v723, 0.0
    %v788 = vmax.f32 %v724, 0.0
    %v789 = vmax.f32 %v725, 0.0
    %v790 = vmax.f32 %v726, 0.0
    %v791 = vmax.f32 %v727, 0.0
    %v792 = vmax.f32 %v728, 0.0
    %v793 = vmax.f32 %v729, 0.0
    %v794 = vmax.f32 %v730, 0.0
    %v795 = vmax.f32 %v731, 0.0
    %v796 = vmax.f32 %v732, 0.0
    %v797 = vmax.f32 %v733, 0.0
    %v798 = vmax.f32 %v734, 0.0
    %v799 = vmax.f32 %v735, 0.0
    %v800 = vmax.f32 %v736, 0.0
    %v801 = vmax.f32 %v737, 0.0
    %v802 = vmax.f32 %v738, 0.0
    %v803 = vmax.f32 %v739, 0.0
    %v804 = vmax.f32 %v740, 0.0
    %v805 = vmax.f32 %v741, 0.0
    %v806 = vmax.f32 %v742, 0.0
    %v807 = vmax.f32 %v743, 0.0
    %v808 = vmax.f32 %v744, 0.0
    %v809 = vmax.f32 %v745, 0.0
    %v810 = vmax.f32 %v746, 0.0
    %v811 = vmax.f32 %v747, 0.0
    %v812 = vmax.f32 %v748, 0.0
    %v813 = vmax.f32 %v749, 0.0
    %v814 = vmax.f32 %v750, 0.0
    %v815 = vmax.f32 %v751, 0.0
    %v816 = vmax.f32 %v752, 0.0
    %v817 = vmax.f32 %v753, 0.0
    %v818 = vmax.f32 %v754, 0.0
    %819 = vst [vmem:[#allocation7] sm:$0xff] %v755
    %820 = vst [vmem:[#allocation7 + $0x8] sm:$0xff] %v756
    %821 = vst [vmem:[#allocation7 + $0x10] sm:$0xff] %v757
    %822 = vst [vmem:[#allocation7 + $0x18] sm:$0xff] %v758
    %823 = vst [vmem:[#allocation7 + $0x20] sm:$0xff] %v759
    %824 = vst [vmem:[#allocation7 + $0x28] sm:$0xff] %v760
    %825 = vst [vmem:[#allocation7 + $0x30] sm:$0xff] %v761
    %826 = vst [vmem:[#allocation7 + $0x38] sm:$0xff] %v762
    %827 = vst [vmem:[#allocation7 + $0x40] sm:$0xff] %v763
    %828 = vst [vmem:[#allocation7 + $0x48] sm:$0xff] %v764
    %829 = vst [vmem:[#allocation7 + $0x50] sm:$0xff] %v765
    %830 = vst [vmem:[#allocation7 + $0x58] sm:$0xff] %v766
    %831 = vst [vmem:[#allocation7 + $0x60] sm:$0xff] %v767
    %832 = vst [vmem:[#allocation7 + $0x68] sm:$0xff] %v768
    %833 = vst [vmem:[#allocation7 + $0x70] sm:$0xff] %v769
    %834 = vst [vmem:[#allocation7 + $0x78] sm:$0xff] %v770
    %835 = vst [vmem:[#allocation7 + $0x80] sm:$0xff] %v771
    %836 = vst [vmem:[#allocation7 + $0x88] sm:$0xff] %v772
    %837 = vst [vmem:[#allocation7 + $0x90] sm:$0xff] %v773
    %838 = vst [vmem:[#allocation7 + $0x98] sm:$0xff] %v774
    %839 = vst [vmem:[#allocation7 + $0xa0] sm:$0xff] %v775
    %840 = vst [vmem:[#allocation7 + $0xa8] sm:$0xff] %v776
    %841 = vst [vmem:[#allocation7 + $0xb0] sm:$0xff] %v777
    %842 = vst [vmem:[#allocation7 + $0xb8] sm:$0xff] %v778
    %843 = vst [vmem:[#allocation7 + $0xc0] sm:$0xff] %v779
    %844 = vst [vmem:[#allocation7 + $0xc8] sm:$0xff] %v780
    %845 = vst [vmem:[#allocation7 + $0xd0] sm:$0xff] %v781
    %846 = vst [vmem:[#allocation7 + $0xd8] sm:$0xff] %v782
    %847 = vst [vmem:[#allocation7 + $0xe0] sm:$0xff] %v783
    %848 = vst [vmem:[#allocation7 + $0xe8] sm:$0xff] %v784
    %849 = vst [vmem:[#allocation7 + $0xf0] sm:$0xff] %v785
    %850 = vst [vmem:[#allocation7 + $0xf8] sm:$0xff] %v786
    %851 = vst [vmem:[#allocation7 + $0x100] sm:$0xff] %v787
    %852 = vst [vmem:[#allocation7 + $0x108] sm:$0xff] %v788
    %853 = vst [vmem:[#allocation7 + $0x110] sm:$0xff] %v789
    %854 = vst [vmem:[#allocation7 + $0x118] sm:$0xff] %v790
    %855 = vst [vmem:[#allocation7 + $0x120] sm:$0xff] %v791
    %856 = vst [vmem:[#allocation7 + $0x128] sm:$0xff] %v792
    %857 = vst [vmem:[#allocation7 + $0x130] sm:$0xff] %v793
    %858 = vst [vmem:[#allocation7 + $0x138] sm:$0xff] %v794
    %859 = vst [vmem:[#allocation7 + $0x140] sm:$0xff] %v795
    %860 = vst [vmem:[#allocation7 + $0x148] sm:$0xff] %v796
    %861 = vst [vmem:[#allocation7 + $0x150] sm:$0xff] %v797
    %862 = vst [vmem:[#allocation7 + $0x158] sm:$0xff] %v798
    %863 = vst [vmem:[#allocation7 + $0x160] sm:$0xff] %v799
    %864 = vst [vmem:[#allocation7 + $0x168] sm:$0xff] %v800
    %865 = vst [vmem:[#allocation7 + $0x170] sm:$0xff] %v801
    %866 = vst [vmem:[#allocation7 + $0x178] sm:$0xff] %v802
    %867 = vst [vmem:[#allocation7 + $0x180] sm:$0xff] %v803
    %868 = vst [vmem:[#allocation7 + $0x188] sm:$0xff] %v804
    %869 = vst [vmem:[#allocation7 + $0x190] sm:$0xff] %v805
    %870 = vst [vmem:[#allocation7 + $0x198] sm:$0xff] %v806
    %871 = vst [vmem:[#allocation7 + $0x1a0] sm:$0xff] %v807
    %872 = vst [vmem:[#allocation7 + $0x1a8] sm:$0xff] %v808
    %873 = vst [vmem:[#allocation7 + $0x1b0] sm:$0xff] %v809
    %874 = vst [vmem:[#allocation7 + $0x1b8] sm:$0xff] %v810
    %875 = vst [vmem:[#allocation7 + $0x1c0] sm:$0xff] %v811
    %876 = vst [vmem:[#allocation7 + $0x1c8] sm:$0xff] %v812
    %877 = vst [vmem:[#allocation7 + $0x1d0] sm:$0xff] %v813
    %878 = vst [vmem:[#allocation7 + $0x1d8] sm:$0xff] %v814
    %879 = vst [vmem:[#allocation7 + $0x1e0] sm:$0xff] %v815
    %880 = vst [vmem:[#allocation7 + $0x1e8] sm:$0xff] %v816
    %881 = vst [vmem:[#allocation7 + $0x1f0] sm:$0xff] %v817
    %882 = vst [vmem:[#allocation7 + $0x1f8] sm:$0xff] %v818
    // Predicated region
    $region18: #{tpu_custom_call.1} parent=1 // pred_check
      _
    $region19: #{tpu_custom_call.1} parent=1 // pred_check_branch
      %884 = sbr.rel (0) target = $region21
    $region20: #{tpu_custom_call.1} parent=1 // pred_region
      %s886 = ssub.s32 8192, 8192
      %887 = vsyncadd [#allocation4], %s886
      %s888 = sshll.u32 [#allocation7], 4
      %s889 = int_to_ptr.vmem [resolvable:$true] %s888
      %894 = dma.vmem_to_hbm [thread:$0]  %s889, 8192, %s2, [#allocation4], 512, 512, 32
    $region21: #{tpu_custom_call.1} parent=1 // pred_fallthru
      _
    // Predicated region
    $region22: #{tpu_custom_call.1} parent=1 // pred_check
      _
    $region23: #{tpu_custom_call.1} parent=1 // pred_check_branch
      %896 = sbr.rel (0) target = $region25
    $region24: #{tpu_custom_call.1} parent=1 // pred_region
      %897 = dma.done [#allocation4], 8192
    $region25: #{tpu_custom_call.1} parent=1 // pred_fallthru
      _
    %898 = vsyncpa [#allocation3], 1
    %899 = vsyncpa [#allocation4], 1
    %900 = vsyncpa [#allocation5], 1

</llo_original>
